<compile_context>
chip_gen: v7x
topology: tpu7x:2x2x1
jax: 0.10.0
libtpu: 0.0.40
codegen_flags: <defaults>
</compile_context>

<pallas_src>
import math

import jax
import jax.numpy as jnp
from jax.experimental import pallas as pl
from jax.experimental.pallas import tpu as pltpu


def _round_up(x: int, m: int) -> int:
    return ((x + m - 1) // m) * m


def _sublane_align(dtype) -> int:
    size = jnp.dtype(dtype).itemsize
    if size >= 4:
        return 8
    if size == 2:
        return 16
    return 32


def _vmem_budget_bytes() -> int:
    """~75% of physical VMEM per TensorCore (48 MiB v7x, 96 MiB v5e/v6e)."""
    cap = 64 << 20
    try:
        info = pltpu.get_tpu_info()
        cap = int(getattr(info, "vmem_capacity_bytes", cap))
    except Exception:
        pass
    return (cap * 3) // 4


def _pick_tm(R: int, cap: int, align: int) -> int:
    """Row tile: whole R if it fits (block == full dim, no alignment needed),
    else a divisor of R that is a multiple of `align`, else a padded tile."""
    if R <= cap:
        return R
    t = (cap // align) * align
    while t >= align:
        if R % t == 0:
            return t
        t -= align
    return max((cap // align) * align, align)


# --------------------------- kernels ---------------------------------------


def _vlinear_resident_kernel(x_ref, w_ref, b_ref, o_ref):
    # x_ref: (Eb, tm, I), w_ref: (Eb, I, O), b_ref: (Eb, 1, O), o_ref: (Eb, tm, O)
    acc = jnp.einsum("emk,ekn->emn", x_ref[...], w_ref[...],
                     preferred_element_type=jnp.float32)
    o_ref[...] = (acc + b_ref[...].astype(jnp.float32)).astype(o_ref.dtype)


def _vlinear_tiled_kernel(x_ref, w_ref, b_ref, o_ref, acc_ref):
    # x_ref: (1, tm, tk), w_ref: (1, tk, tn), b_ref: (1, 1, tn)
    # o_ref: (1, tm, tn), acc_ref: (tm, tn) f32 scratch
    k = pl.program_id(3)

    @pl.when(k == 0)
    def _():
        acc_ref[...] = jnp.zeros_like(acc_ref)

    acc_ref[...] += jnp.dot(x_ref[0], w_ref[0],
                            preferred_element_type=jnp.float32)

    @pl.when(k == pl.num_programs(3) - 1)
    def _():
        o_ref[0] = (acc_ref[...] + b_ref[0].astype(jnp.float32)).astype(o_ref.dtype)


# --------------------------- wrapper ----------------------------------------


def vectorized_linear(x, weight, bias, *, compute_dtype=jnp.bfloat16,
                      tm_cap=512, tn_cap=256, tk_cap=512):
    """Ensemble linear layer: x @ weight + bias per ensemble member.

    compute_dtype: dtype of the MXU operands (default bf16; accumulation and
                   bias add stay in float32).  Pass jnp.float32 for exact math.
    """
    orig_ndim = x.ndim
    if orig_ndim == 4:
        E, B, S, I = x.shape
        x2 = x.reshape(E, B * S, I)
    elif orig_ndim == 3:
        E, B, I = x.shape
        x2 = x
    else:
        raise ValueError("x must be 3-D or 4-D")

    E, R, I = x2.shape
    O = weight.shape[-1]
    out_dtype = x.dtype

    if compute_dtype is not None and x2.dtype != compute_dtype:
        x2 = x2.astype(compute_dtype)
    if compute_dtype is not None and weight.dtype != compute_dtype:
        weight = weight.astype(compute_dtype)

    in_itemsize = jnp.dtype(x2.dtype).itemsize
    out_itemsize = jnp.dtype(out_dtype).itemsize
    b_itemsize = jnp.dtype(bias.dtype).itemsize
    align_m = _sublane_align(x2.dtype)
    budget = _vmem_budget_bytes()

    # ---------------- fast path: per-ensemble weight VMEM-resident ----------
    def _resident_bytes(Eb, tm):
        # BlockSpec double-buffers every operand; einsum goes through an f32
        # intermediate of (Eb, tm, O).
        return (2 * Eb * tm * I * in_itemsize          # x tile
                + 2 * Eb * I * O * in_itemsize         # weight slab
                + 2 * Eb * O * b_itemsize              # bias
                + 2 * Eb * tm * O * out_itemsize       # out tile
                + Eb * tm * O * 4)                     # f32 intermediate

    tm_res = _pick_tm(R, tm_cap, align_m)
    use_resident = _resident_bytes(1, tm_res) <= budget
    if not use_resident:
        tm_small = _pick_tm(R, max(align_m, 128), align_m)
        if _resident_bytes(1, tm_small) <= budget:
            tm_res, use_resident = tm_small, True

    if use_resident:
        # Block the ensemble axis for tiny per-ensemble problems (amortizes
        # the ~0.35us/step pipeline overhead).
        Eb = 1
        for cand in range(min(E, 8), 0, -1):
            if E % cand == 0 and _resident_bytes(cand, tm_res) <= budget:
                Eb = cand
                break

        tm = tm_res
        Rp = _round_up(R, tm)
        x_in = x2 if Rp == R else jnp.pad(x2, ((0, 0), (0, Rp - R), (0, 0)))

        grid = (E // Eb, Rp // tm)

        cost = pl.CostEstimate(
            flops=2 * E * Rp * I * O,
            transcendentals=0,
            bytes_accessed=(E * Rp * I * in_itemsize      # x read once
                            + E * I * O * in_itemsize     # weight read once
                            + E * O * b_itemsize
                            + E * Rp * O * out_itemsize))

        out = pl.pallas_call(
            _vlinear_resident_kernel,
            out_shape=jax.ShapeDtypeStruct((E, Rp, O), out_dtype),
            grid_spec=pltpu.PrefetchScalarGridSpec(
                num_scalar_prefetch=0,
                grid=grid,
                in_specs=[
                    pl.BlockSpec((Eb, tm, I), lambda e, i: (e, i, 0)),
                    pl.BlockSpec((Eb, I, O), lambda e, i: (e, 0, 0)),
                    pl.BlockSpec((Eb, 1, O), lambda e, i: (e, 0, 0)),
                ],
                out_specs=pl.BlockSpec((Eb, tm, O), lambda e, i: (e, i, 0)),
            ),
            compiler_params=pltpu.CompilerParams(
                dimension_semantics=("parallel", "parallel"),
                vmem_limit_bytes=int(budget),
            ),
            cost_estimate=cost,
        )(x_in, weight, bias)

        if Rp != R:
            out = out[:, :R, :]

    else:
        # ---------------- general path: M/N/K tiling + f32 accumulator -------
        tm = min(_round_up(R, align_m), tm_cap)
        tn = min(_round_up(O, 128), tn_cap)
        tk = min(_round_up(I, 128), tk_cap)

        Rp = _round_up(R, tm)
        Op = _round_up(O, tn)
        Ip = _round_up(I, tk)

        x_in, w_in, b_in = x2, weight, bias
        if (Rp, Ip) != (R, I):
            x_in = jnp.pad(x2, ((0, 0), (0, Rp - R), (0, Ip - I)))
        if (Ip, Op) != (I, O):
            w_in = jnp.pad(weight, ((0, 0), (0, Ip - I), (0, Op - O)))
        if Op != O:
            b_in = jnp.pad(bias, ((0, 0), (0, 0), (0, Op - O)))

        grid = (E, Rp // tm, Op // tn, Ip // tk)

        n_refetch_x = Op // tn   # x re-streamed once per N tile
        n_refetch_w = Rp // tm   # weight re-streamed once per M tile
        cost = pl.CostEstimate(
            flops=2 * E * Rp * Ip * Op,
            transcendentals=0,
            bytes_accessed=(E * Rp * Ip * in_itemsize * n_refetch_x
                            + E * Ip * Op * in_itemsize * n_refetch_w
                            + E * Op * b_itemsize * n_refetch_w
                            + E * Rp * Op * out_itemsize))

        out = pl.pallas_call(
            _vlinear_tiled_kernel,
            out_shape=jax.ShapeDtypeStruct((E, Rp, Op), out_dtype),
            grid_spec=pltpu.PrefetchScalarGridSpec(
                num_scalar_prefetch=0,
                grid=grid,
                in_specs=[
                    pl.BlockSpec((1, tm, tk), lambda e, i, j, k: (e, i, k)),
                    pl.BlockSpec((1, tk, tn), lambda e, i, j, k: (e, k, j)),
                    pl.BlockSpec((1, 1, tn), lambda e, i, j, k: (e, 0, j)),
                ],
                out_specs=pl.BlockSpec((1, tm, tn), lambda e, i, j, k: (e, i, j)),
                scratch_shapes=[pltpu.VMEM((tm, tn), jnp.float32)],
            ),
            compiler_params=pltpu.CompilerParams(
                dimension_semantics=("parallel", "parallel", "parallel",
                                     "arbitrary"),
                vmem_limit_bytes=int(budget),
            ),
            cost_estimate=cost,
        )(x_in, w_in, b_in)

        if (Rp, Op) != (R, O):
            out = out[:, :R, :O]

    if orig_ndim == 4:
        out = out.reshape(E, B, S, O)
    return out


# --------------------------- init (mirrors PyTorch) -------------------------


def init_params(key, in_features, out_features, ensemble_size, dtype=jnp.float32):
    """Deterministic init mirroring the PyTorch module's reset_parameters.

    Note: fan_in = out_features intentionally replicates the PyTorch
    VectorizedLinear quirk (dim-1 of an (in, out) weight), not "proper" Kaiming.
    """
    kw, kb = jax.random.split(key)
    a = math.sqrt(5.0)
    fan_in_kaiming = out_features
    gain = math.sqrt(2.0 / (1.0 + a * a))
    w_bound = gain * math.sqrt(3.0 / fan_in_kaiming)
    weight = jax.random.uniform(
        kw, (ensemble_size, in_features, out_features),
        minval=-w_bound, maxval=w_bound, dtype=dtype)
    b_bound = 1.0 / math.sqrt(fan_in_kaiming) if fan_in_kaiming > 0 else 0.0
    bias = jax.random.uniform(
        kb, (ensemble_size, 1, out_features),
        minval=-b_bound, maxval=b_bound, dtype=dtype)
    return weight, bias


if __name__ == "__main__":
    key = jax.random.PRNGKey(0)
    k_x, k_p = jax.random.split(key)

    ensemble_size = 4
    batch = 8
    in_features = 32
    out_features = 32

    x = jax.random.normal(k_x, (ensemble_size, batch, in_features), jnp.float32)
    weight, bias = init_params(k_p, in_features, out_features, ensemble_size)

    # 3-D path, f32 MXU operands (strict check against pure-JAX reference).
    out = jax.block_until_ready(
        vectorized_linear(x, weight, bias, compute_dtype=jnp.float32))
    ref = jnp.einsum("ebi,eio->ebo", x, weight) + bias
    assert out.shape == (ensemble_size, batch, out_features)
    assert jnp.allclose(out, ref, atol=1e-5, rtol=1e-5)

    # 4-D path (PyTorch einsum 'eio,ebsi->ebso' + bias.unsqueeze(1)).
    seq = 2
    x4 = jax.random.normal(k_x, (ensemble_size, batch, seq, in_features),
                           jnp.float32)
    out4 = jax.block_until_ready(
        vectorized_linear(x4, weight, bias, compute_dtype=jnp.float32))
    ref4 = jnp.einsum("eio,ebsi->ebso", weight, x4) + bias[:, None]
    assert out4.shape == (ensemble_size, batch, seq, out_features)
    assert jnp.allclose(out4, ref4, atol=1e-5, rtol=1e-5)

    # Default path: bf16 MXU operands, f32 accumulation (loose tolerance).
    out_bf16 = jax.block_until_ready(vectorized_linear(x, weight, bias))
    assert jnp.allclose(out_bf16, ref, atol=5e-2, rtol=5e-2)

    print("KERNEL_OK")
</pallas_src>

<mosaic_0001>
module attributes {stable_mosaic.version = 11 : i64} {
  func.func @_vlinear_resident_kernel(%arg0: i32, %arg1: i32, %arg2: memref<4x8x32xf32, #tpu.memory_space<vmem>>, %arg3: memref<4x32x32xf32, #tpu.memory_space<vmem>>, %arg4: memref<4x1x32xf32, #tpu.memory_space<vmem>>, %arg5: memref<4x8x32xf32, #tpu.memory_space<vmem>>) attributes {dimension_semantics = [#tpu.dimension_semantics<parallel>, #tpu.dimension_semantics<parallel>], iteration_bounds = array<i64: 1, 1>, scalar_prefetch = 0 : i64, scratch_operands = 0 : i64, tpu.core_type = #tpu.core_type<tc>, window_params = [{transform_indices = @transform_0, window_bounds = array<i64: 4, 8, 32>}, {transform_indices = @transform_1, window_bounds = array<i64: 4, 32, 32>}, {transform_indices = @transform_2, window_bounds = array<i64: 4, 1, 32>}, {transform_indices = @transform_3, window_bounds = array<i64: 4, 8, 32>}]} {
    %c0 = arith.constant 0 : index
    %c0_0 = arith.constant 0 : index
    %c0_1 = arith.constant 0 : index
    %0 = vector.load %arg2[%c0, %c0_0, %c0_1] : memref<4x8x32xf32, #tpu.memory_space<vmem>>, vector<4x8x32xf32>
    %c0_2 = arith.constant 0 : index
    %c0_3 = arith.constant 0 : index
    %c0_4 = arith.constant 0 : index
    %1 = vector.load %arg3[%c0_2, %c0_3, %c0_4] : memref<4x32x32xf32, #tpu.memory_space<vmem>>, vector<4x32x32xf32>
    "tpu.trace_start"() <{level = 10 : i32, message = "emk,ekn->emn"}> : () -> ()
    %cst = arith.constant dense<0.000000e+00> : vector<4x8x32xf32>
    %2 = tpu.matmul %0, %1, %cst {dimension_numbers = #tpu.dot_dimension_numbers<[2], [1], [1], [2], [0, 0, 0, 1, 1, 2], [0], [0]>} : vector<4x8x32xf32>, vector<4x32x32xf32>, vector<4x8x32xf32> -> vector<4x8x32xf32>
    "tpu.trace_stop"() : () -> ()
    %c0_5 = arith.constant 0 : index
    %c0_6 = arith.constant 0 : index
    %c0_7 = arith.constant 0 : index
    %3 = vector.load %arg4[%c0_5, %c0_6, %c0_7] : memref<4x1x32xf32, #tpu.memory_space<vmem>>, vector<4x1x32xf32>
    %4 = vector.broadcast %3 : vector<4x1x32xf32> to vector<4x8x32xf32>
    %5 = arith.addf %2, %4 : vector<4x8x32xf32>
    %c0_8 = arith.constant 0 : index
    %c0_9 = arith.constant 0 : index
    %c0_10 = arith.constant 0 : index
    %6 = vector.load %arg5[%c0_8, %c0_9, %c0_10] : memref<4x8x32xf32, #tpu.memory_space<vmem>>, vector<4x8x32xf32>
    tpu.vector_store %arg5[%c0_8, %c0_9, %c0_10], %5 {strides = array<i32>} : memref<4x8x32xf32, #tpu.memory_space<vmem>>, vector<4x8x32xf32>,
    return
  }
  func.func @transform_0(%arg0: i32, %arg1: i32) -> (i32, i32, i32) {
    %c0_i32 = arith.constant 0 : i32
    %c0_i32_0 = arith.constant 0 : i32
    return %arg0, %arg1, %c0_i32 : i32, i32, i32
  }
  func.func @transform_1(%arg0: i32, %arg1: i32) -> (i32, i32, i32) {
    %c0_i32 = arith.constant 0 : i32
    %c0_i32_0 = arith.constant 0 : i32
    %c0_i32_1 = arith.constant 0 : i32
    return %arg0, %c0_i32, %c0_i32_0 : i32, i32, i32
  }
  func.func @transform_2(%arg0: i32, %arg1: i32) -> (i32, i32, i32) {
    %c0_i32 = arith.constant 0 : i32
    %c0_i32_0 = arith.constant 0 : i32
    %c0_i32_1 = arith.constant 0 : i32
    return %arg0, %c0_i32, %c0_i32_0 : i32, i32, i32
  }
  func.func @transform_3(%arg0: i32, %arg1: i32) -> (i32, i32, i32) {
    %c0_i32 = arith.constant 0 : i32
    %c0_i32_0 = arith.constant 0 : i32
    return %arg0, %arg1, %c0_i32 : i32, i32, i32
  }
}

</mosaic_0001>

<llo_original>
// kernel: tpu_custom_call.1
$region0: #{tpu_custom_call.1}
  #allocation0 [shape = 'u32[]', space=smem, size = 0x4, offset = 0x4, fixed_abs, tag = 'smem constant byte address 0x4 - core index']
  #allocation1 [shape = 'u32[144,128]{1,0:T(1,128)}', space=vmem, size = 0x12000, scoped, tag = 'internal scratch']
  %s0 = inlined_call_operand.hbm [shape: f32[4,8,32], index: 0, kind: input, shape index: {}]
  %s1 = inlined_call_operand.hbm [shape: f32[4,32,32], index: 1, kind: input, shape index: {}]
  %s2 = inlined_call_operand.vmem [shape: f32[4,1,32], index: 2, kind: input, shape index: {}]
  %s3 = inlined_call_operand.hbm [shape: f32[4,8,32], index: 3, kind: output, shape index: {}]
  %s4 = sld [smem:[#allocation0]]
  $region30: #{tpu_custom_call.1} parent=0
    _
  %s6 = ssub.s32 1, %s4
  %s7 = scalar_select 0, %s6, %s4
  $region1: #{tpu_custom_call.1} parent=0
    #allocation2 [shape = 'u8[16384]{0}', space=vmem, size = 0x4000, scoped, tag = 'input window, operand 0, single buffered']
    #allocation3 [shape = 's32[1]{0}', space=sflag, size = 0x4, scoped, tag = 'scoped memory for tpu_custom_call.1']
    #allocation4 [shape = 's32[1]{0}', space=sflag, size = 0x4, scoped, tag = 'scoped memory for tpu_custom_call.1']
    #allocation5 [shape = 'u8[65536]{0}', space=vmem, size = 0x10000, scoped, tag = 'input window, operand 1, single buffered']
    #allocation6 [shape = 's32[1]{0}', space=sflag, size = 0x4, scoped, tag = 'scoped memory for tpu_custom_call.1']
    #allocation7 [shape = 'u8[16384]{0}', space=vmem, size = 0x4000, scoped, tag = 'output window, operand 0, single buffered']
    %8 = vsyncpa [#allocation3], 0
    %9 = vsyncpa [#allocation6], 0
    %10 = vsyncpa [#allocation4], 0
    // Predicated region
    $region2: #{tpu_custom_call.1} parent=1 // pred_check
      _
    $region3: #{tpu_custom_call.1} parent=1 // pred_check_branch
      %12 = sbr.rel (0) target = $region5
    $region4: #{tpu_custom_call.1} parent=1 // pred_region
      %s14 = ssub.s32 512, 512
      %15 = vsyncadd [#allocation3], %s14
      %s16 = sshll.u32 [#allocation2], 4
      %s17 = int_to_ptr.vmem [resolvable:$true] %s16
      %22 = dma.hbm_to_vmem [thread:$0]  %s0, 512, %s17, [#allocation3], 128, 128, 8
    $region5: #{tpu_custom_call.1} parent=1 // pred_fallthru
      _
    // Predicated region
    $region6: #{tpu_custom_call.1} parent=1 // pred_check
      _
    $region7: #{tpu_custom_call.1} parent=1 // pred_check_branch
      %24 = sbr.rel (0) target = $region9
    $region8: #{tpu_custom_call.1} parent=1 // pred_region
      %s26 = ssub.s32 2048, 2048
      %27 = vsyncadd [#allocation6], %s26
      %s28 = sshll.u32 [#allocation5], 4
      %s29 = int_to_ptr.vmem [resolvable:$true] %s28
      %34 = dma.hbm_to_vmem [thread:$0]  %s1, 2048, %s29, [#allocation6], 128, 128, 8
    $region9: #{tpu_custom_call.1} parent=1 // pred_fallthru
      _
    // Predicated region
    $region10: #{tpu_custom_call.1} parent=1 // pred_check
      _
    $region11: #{tpu_custom_call.1} parent=1 // pred_check_branch
      %36 = sbr.rel (0) target = $region13
    $region12: #{tpu_custom_call.1} parent=1 // pred_region
      _
    $region13: #{tpu_custom_call.1} parent=1 // pred_fallthru
      _
    // Predicated region
    $region14: #{tpu_custom_call.1} parent=1 // pred_check
      _
    $region15: #{tpu_custom_call.1} parent=1 // pred_check_branch
      %38 = sbr.rel (0) target = $region17
    $region16: #{tpu_custom_call.1} parent=1 // pred_region
      %39 = dma.done [#allocation3], 512
    $region17: #{tpu_custom_call.1} parent=1 // pred_fallthru
      _
    // Predicated region
    $region18: #{tpu_custom_call.1} parent=1 // pred_check
      _
    $region19: #{tpu_custom_call.1} parent=1 // pred_check_branch
      %41 = sbr.rel (0) target = $region21
    $region20: #{tpu_custom_call.1} parent=1 // pred_region
      %42 = dma.done [#allocation6], 2048
    $region21: #{tpu_custom_call.1} parent=1 // pred_fallthru
      _
    %v43 = vld [vmem:[#allocation2] sm:$0xff]
    %v44 = vld [vmem:[#allocation2 + $0x8] sm:$0xff]
    %v45 = vld [vmem:[#allocation2 + $0x10] sm:$0xff]
    %v46 = vld [vmem:[#allocation2 + $0x18] sm:$0xff]
    %v47 = vld [vmem:[#allocation5] sm:$0xff]
    %v48 = vld [vmem:[#allocation5 + $0x8] sm:$0xff]
    %v49 = vld [vmem:[#allocation5 + $0x10] sm:$0xff]
    %v50 = vld [vmem:[#allocation5 + $0x18] sm:$0xff]
    %v51 = vld [vmem:[#allocation5 + $0x20] sm:$0xff]
    %v52 = vld [vmem:[#allocation5 + $0x28] sm:$0xff]
    %v53 = vld [vmem:[#allocation5 + $0x30] sm:$0xff]
    %v54 = vld [vmem:[#allocation5 + $0x38] sm:$0xff]
    %v55 = vld [vmem:[#allocation5 + $0x40] sm:$0xff]
    %v56 = vld [vmem:[#allocation5 + $0x48] sm:$0xff]
    %v57 = vld [vmem:[#allocation5 + $0x50] sm:$0xff]
    %v58 = vld [vmem:[#allocation5 + $0x58] sm:$0xff]
    %v59 = vld [vmem:[#allocation5 + $0x60] sm:$0xff]
    %v60 = vld [vmem:[#allocation5 + $0x68] sm:$0xff]
    %v61 = vld [vmem:[#allocation5 + $0x70] sm:$0xff]
    %v62 = vld [vmem:[#allocation5 + $0x78] sm:$0xff]
    %v63 = vld [vmem:[%s2] sm:$0x1]
    %v64 = vld [vmem:[%s2 + $0x1] sm:$0x1]
    %v65 = vld [vmem:[%s2 + $0x2] sm:$0x1]
    %v66 = vld [vmem:[%s2 + $0x3] sm:$0x1]
    %v71 = vlaneseq
    %v72 = vshrl.u32 %v71, 7
    %v73 = vsub.s32 0, %v72
    %v74 = vrot.slane %v63, %v73
    %v75 = vlaneseq
    %v76 = vshrl.u32 %v75, 7
    %v77 = vsub.s32 0, %v76
    %v78 = vrot.slane %v64, %v77
    %v79 = vlaneseq
    %v80 = vshrl.u32 %v79, 7
    %v81 = vsub.s32 0, %v80
    %v82 = vrot.slane %v65, %v81
    %v83 = vlaneseq
    %v84 = vshrl.u32 %v83, 7
    %v85 = vsub.s32 0, %v84
    %v86 = vrot.slane %v66, %v85
    %vm91 = vcmask 261120
    %v93 = vsel %vm91, %v43, 0
    %95 = vmatprep.subr.mxu0 0.0
    %96 = vmatpush1.msra.mxu0 %v47
    %97 = vmatprep.subr.mxu0 0.0
    %98 = vmatpush1.msra.mxu0 %v48
    %99 = vmatprep.subr.mxu0 0.0
    %100 = vmatpush1.msra.mxu0 %v49
    %101 = vmatprep.subr.mxu0 0.0
    %102 = vmatpush1.msra.mxu0 %v50
    %103 = vmatprep.subr.mxu0 0.0
    %104 = vmatpush1.msra.mxu0 0.0
    %105 = vmatprep.subr.mxu0 0.0
    %106 = vmatpush1.msra.mxu0 0.0
    %107 = vmatprep.subr.mxu0 0.0
    %108 = vmatpush1.msra.mxu0 0.0
    %109 = vmatprep.subr.mxu0 0.0
    %110 = vmatpush1.msra.mxu0 0.0
    %111 = vmatprep.subr.mxu0 0.0
    %112 = vmatpush1.msra.mxu0 0.0
    %113 = vmatprep.subr.mxu0 0.0
    %114 = vmatpush1.msra.mxu0 0.0
    %115 = vmatprep.subr.mxu0 0.0
    %116 = vmatpush1.msra.mxu0 0.0
    %117 = vmatprep.subr.mxu0 0.0
    %118 = vmatpush1.msra.mxu0 0.0
    %119 = vmatprep.subr.mxu0 0.0
    %120 = vmatpush1.msra.mxu0 0.0
    %121 = vmatprep.subr.mxu0 0.0
    %122 = vmatpush1.msra.mxu0 0.0
    %123 = vmatprep.subr.mxu0 0.0
    %124 = vmatpush1.msra.mxu0 0.0
    %125 = vmatprep.subr.mxu0 0.0
    %126 = vmatpush1.msra.mxu0 0.0
    %127 = vmatprep.subr.mxu0 0.0
    %128 = vmatpush1.msra.mxu0 0.0
    %129 = vmatprep.subr.mxu0 0.0
    %130 = vmatpush1.msra.mxu0 0.0
    %131 = vmatprep.subr.mxu0 0.0
    %132 = vmatpush1.msra.mxu0 0.0
    %133 = vmatprep.subr.mxu0 0.0
    %134 = vmatpush1.msra.mxu0 0.0
    %135 = vmatprep.subr.mxu0 0.0
    %136 = vmatpush1.msra.mxu0 0.0
    %137 = vmatprep.subr.mxu0 0.0
    %138 = vmatpush1.msra.mxu0 0.0
    %139 = vmatprep.subr.mxu0 0.0
    %140 = vmatpush1.msra.mxu0 0.0
    %141 = vmatprep.subr.mxu0 0.0
    %142 = vmatpush1.msra.mxu0 0.0
    %143 = vmatprep.subr.mxu0 0.0
    %144 = vmatpush1.msra.mxu0 0.0
    %145 = vmatprep.subr.mxu0 0.0
    %146 = vmatpush1.msra.mxu0 0.0
    %147 = vmatprep.subr.mxu0 0.0
    %148 = vmatpush1.msra.mxu0 0.0
    %149 = vmatprep.subr.mxu0 0.0
    %150 = vmatpush1.msra.mxu0 0.0
    %151 = vmatprep.subr.mxu0 0.0
    %152 = vmatpush1.msra.mxu0 0.0
    %153 = vmatprep.subr.mxu0 0.0
    %154 = vmatpush1.msra.mxu0 0.0
    %155 = vmatprep.subr.mxu0 0.0
    %156 = vmatpush1.msra.mxu0 0.0
    %157 = vmatprep.subr.mxu0 0.0
    %158 = vmatpush1.msra.mxu0 0.0
    %159 = vmatprep.mubr.f32.mxu0 0.0
    %160 = vmatmul.mubr.f32.gmra.mrb[0].mxu0 %v93
    %v161 = vpop.f32.mrb[0].mxu0
    %v162 = vadd.f32 %v74, %v161
    %v163 = vpop.f32.mrb[0].mxu0
    %164 = vdwg.mxu0
    %v166 = vsel %vm91, %v44, 0
    %168 = vmatprep.subr.mxu0 0.0
    %169 = vmatpush1.msra.mxu0 %v51
    %170 = vmatprep.subr.mxu0 0.0
    %171 = vmatpush1.msra.mxu0 %v52
    %172 = vmatprep.subr.mxu0 0.0
    %173 = vmatpush1.msra.mxu0 %v53
    %174 = vmatprep.subr.mxu0 0.0
    %175 = vmatpush1.msra.mxu0 %v54
    %176 = vmatprep.subr.mxu0 0.0
    %177 = vmatpush1.msra.mxu0 0.0
    %178 = vmatprep.subr.mxu0 0.0
    %179 = vmatpush1.msra.mxu0 0.0
    %180 = vmatprep.subr.mxu0 0.0
    %181 = vmatpush1.msra.mxu0 0.0
    %182 = vmatprep.subr.mxu0 0.0
    %183 = vmatpush1.msra.mxu0 0.0
    %184 = vmatprep.subr.mxu0 0.0
    %185 = vmatpush1.msra.mxu0 0.0
    %186 = vmatprep.subr.mxu0 0.0
    %187 = vmatpush1.msra.mxu0 0.0
    %188 = vmatprep.subr.mxu0 0.0
    %189 = vmatpush1.msra.mxu0 0.0
    %190 = vmatprep.subr.mxu0 0.0
    %191 = vmatpush1.msra.mxu0 0.0
    %192 = vmatprep.subr.mxu0 0.0
    %193 = vmatpush1.msra.mxu0 0.0
    %194 = vmatprep.subr.mxu0 0.0
    %195 = vmatpush1.msra.mxu0 0.0
    %196 = vmatprep.subr.mxu0 0.0
    %197 = vmatpush1.msra.mxu0 0.0
    %198 = vmatprep.subr.mxu0 0.0
    %199 = vmatpush1.msra.mxu0 0.0
    %200 = vmatprep.subr.mxu0 0.0
    %201 = vmatpush1.msra.mxu0 0.0
    %202 = vmatprep.subr.mxu0 0.0
    %203 = vmatpush1.msra.mxu0 0.0
    %204 = vmatprep.subr.mxu0 0.0
    %205 = vmatpush1.msra.mxu0 0.0
    %206 = vmatprep.subr.mxu0 0.0
    %207 = vmatpush1.msra.mxu0 0.0
    %208 = vmatprep.subr.mxu0 0.0
    %209 = vmatpush1.msra.mxu0 0.0
    %210 = vmatprep.subr.mxu0 0.0
    %211 = vmatpush1.msra.mxu0 0.0
    %212 = vmatprep.subr.mxu0 0.0
    %213 = vmatpush1.msra.mxu0 0.0
    %214 = vmatprep.subr.mxu0 0.0
    %215 = vmatpush1.msra.mxu0 0.0
    %216 = vmatprep.subr.mxu0 0.0
    %217 = vmatpush1.msra.mxu0 0.0
    %218 = vmatprep.subr.mxu0 0.0
    %219 = vmatpush1.msra.mxu0 0.0
    %220 = vmatprep.subr.mxu0 0.0
    %221 = vmatpush1.msra.mxu0 0.0
    %222 = vmatprep.subr.mxu0 0.0
    %223 = vmatpush1.msra.mxu0 0.0
    %224 = vmatprep.subr.mxu0 0.0
    %225 = vmatpush1.msra.mxu0 0.0
    %226 = vmatprep.subr.mxu0 0.0
    %227 = vmatpush1.msra.mxu0 0.0
    %228 = vmatprep.subr.mxu0 0.0
    %229 = vmatpush1.msra.mxu0 0.0
    %230 = vmatprep.subr.mxu0 0.0
    %231 = vmatpush1.msra.mxu0 0.0
    %232 = vmatprep.mubr.f32.mxu0 0.0
    %233 = vmatmul.mubr.f32.gmra.mrb[0].mxu0 %v166
    %v234 = vpop.f32.mrb[0].mxu0
    %v235 = vadd.f32 %v78, %v234
    %v236 = vpop.f32.mrb[0].mxu0
    %237 = vdwg.mxu0
    %v239 = vsel %vm91, %v45, 0
    %241 = vmatprep.subr.mxu0 0.0
    %242 = vmatpush1.msra.mxu0 %v55
    %243 = vmatprep.subr.mxu0 0.0
    %244 = vmatpush1.msra.mxu0 %v56
    %245 = vmatprep.subr.mxu0 0.0
    %246 = vmatpush1.msra.mxu0 %v57
    %247 = vmatprep.subr.mxu0 0.0
    %248 = vmatpush1.msra.mxu0 %v58
    %249 = vmatprep.subr.mxu0 0.0
    %250 = vmatpush1.msra.mxu0 0.0
    %251 = vmatprep.subr.mxu0 0.0
    %252 = vmatpush1.msra.mxu0 0.0
    %253 = vmatprep.subr.mxu0 0.0
    %254 = vmatpush1.msra.mxu0 0.0
    %255 = vmatprep.subr.mxu0 0.0
    %256 = vmatpush1.msra.mxu0 0.0
    %257 = vmatprep.subr.mxu0 0.0
    %258 = vmatpush1.msra.mxu0 0.0
    %259 = vmatprep.subr.mxu0 0.0
    %260 = vmatpush1.msra.mxu0 0.0
    %261 = vmatprep.subr.mxu0 0.0
    %262 = vmatpush1.msra.mxu0 0.0
    %263 = vmatprep.subr.mxu0 0.0
    %264 = vmatpush1.msra.mxu0 0.0
    %265 = vmatprep.subr.mxu0 0.0
    %266 = vmatpush1.msra.mxu0 0.0
    %267 = vmatprep.subr.mxu0 0.0
    %268 = vmatpush1.msra.mxu0 0.0
    %269 = vmatprep.subr.mxu0 0.0
    %270 = vmatpush1.msra.mxu0 0.0
    %271 = vmatprep.subr.mxu0 0.0
    %272 = vmatpush1.msra.mxu0 0.0
    %273 = vmatprep.subr.mxu0 0.0
    %274 = vmatpush1.msra.mxu0 0.0
    %275 = vmatprep.subr.mxu0 0.0
    %276 = vmatpush1.msra.mxu0 0.0
    %277 = vmatprep.subr.mxu0 0.0
    %278 = vmatpush1.msra.mxu0 0.0
    %279 = vmatprep.subr.mxu0 0.0
    %280 = vmatpush1.msra.mxu0 0.0
    %281 = vmatprep.subr.mxu0 0.0
    %282 = vmatpush1.msra.mxu0 0.0
    %283 = vmatprep.subr.mxu0 0.0
    %284 = vmatpush1.msra.mxu0 0.0
    %285 = vmatprep.subr.mxu0 0.0
    %286 = vmatpush1.msra.mxu0 0.0
    %287 = vmatprep.subr.mxu0 0.0
    %288 = vmatpush1.msra.mxu0 0.0
    %289 = vmatprep.subr.mxu0 0.0
    %290 = vmatpush1.msra.mxu0 0.0
    %291 = vmatprep.subr.mxu0 0.0
    %292 = vmatpush1.msra.mxu0 0.0
    %293 = vmatprep.subr.mxu0 0.0
    %294 = vmatpush1.msra.mxu0 0.0
    %295 = vmatprep.subr.mxu0 0.0
    %296 = vmatpush1.msra.mxu0 0.0
    %297 = vmatprep.subr.mxu0 0.0
    %298 = vmatpush1.msra.mxu0 0.0
    %299 = vmatprep.subr.mxu0 0.0
    %300 = vmatpush1.msra.mxu0 0.0
    %301 = vmatprep.subr.mxu0 0.0
    %302 = vmatpush1.msra.mxu0 0.0
    %303 = vmatprep.subr.mxu0 0.0
    %304 = vmatpush1.msra.mxu0 0.0
    %305 = vmatprep.mubr.f32.mxu0 0.0
    %306 = vmatmul.mubr.f32.gmra.mrb[0].mxu0 %v239
    %v307 = vpop.f32.mrb[0].mxu0
    %v308 = vadd.f32 %v82, %v307
    %v309 = vpop.f32.mrb[0].mxu0
    %310 = vdwg.mxu0
    %v312 = vsel %vm91, %v46, 0
    %314 = vmatprep.subr.mxu0 0.0
    %315 = vmatpush1.msra.mxu0 %v59
    %316 = vmatprep.subr.mxu0 0.0
    %317 = vmatpush1.msra.mxu0 %v60
    %318 = vmatprep.subr.mxu0 0.0
    %319 = vmatpush1.msra.mxu0 %v61
    %320 = vmatprep.subr.mxu0 0.0
    %321 = vmatpush1.msra.mxu0 %v62
    %322 = vmatprep.subr.mxu0 0.0
    %323 = vmatpush1.msra.mxu0 0.0
    %324 = vmatprep.subr.mxu0 0.0
    %325 = vmatpush1.msra.mxu0 0.0
    %326 = vmatprep.subr.mxu0 0.0
    %327 = vmatpush1.msra.mxu0 0.0
    %328 = vmatprep.subr.mxu0 0.0
    %329 = vmatpush1.msra.mxu0 0.0
    %330 = vmatprep.subr.mxu0 0.0
    %331 = vmatpush1.msra.mxu0 0.0
    %332 = vmatprep.subr.mxu0 0.0
    %333 = vmatpush1.msra.mxu0 0.0
    %334 = vmatprep.subr.mxu0 0.0
    %335 = vmatpush1.msra.mxu0 0.0
    %336 = vmatprep.subr.mxu0 0.0
    %337 = vmatpush1.msra.mxu0 0.0
    %338 = vmatprep.subr.mxu0 0.0
    %339 = vmatpush1.msra.mxu0 0.0
    %340 = vmatprep.subr.mxu0 0.0
    %341 = vmatpush1.msra.mxu0 0.0
    %342 = vmatprep.subr.mxu0 0.0
    %343 = vmatpush1.msra.mxu0 0.0
    %344 = vmatprep.subr.mxu0 0.0
    %345 = vmatpush1.msra.mxu0 0.0
    %346 = vmatprep.subr.mxu0 0.0
    %347 = vmatpush1.msra.mxu0 0.0
    %348 = vmatprep.subr.mxu0 0.0
    %349 = vmatpush1.msra.mxu0 0.0
    %350 = vmatprep.subr.mxu0 0.0
    %351 = vmatpush1.msra.mxu0 0.0
    %352 = vmatprep.subr.mxu0 0.0
    %353 = vmatpush1.msra.mxu0 0.0
    %354 = vmatprep.subr.mxu0 0.0
    %355 = vmatpush1.msra.mxu0 0.0
    %356 = vmatprep.subr.mxu0 0.0
    %357 = vmatpush1.msra.mxu0 0.0
    %358 = vmatprep.subr.mxu0 0.0
    %359 = vmatpush1.msra.mxu0 0.0
    %360 = vmatprep.subr.mxu0 0.0
    %361 = vmatpush1.msra.mxu0 0.0
    %362 = vmatprep.subr.mxu0 0.0
    %363 = vmatpush1.msra.mxu0 0.0
    %364 = vmatprep.subr.mxu0 0.0
    %365 = vmatpush1.msra.mxu0 0.0
    %366 = vmatprep.subr.mxu0 0.0
    %367 = vmatpush1.msra.mxu0 0.0
    %368 = vmatprep.subr.mxu0 0.0
    %369 = vmatpush1.msra.mxu0 0.0
    %370 = vmatprep.subr.mxu0 0.0
    %371 = vmatpush1.msra.mxu0 0.0
    %372 = vmatprep.subr.mxu0 0.0
    %373 = vmatpush1.msra.mxu0 0.0
    %374 = vmatprep.subr.mxu0 0.0
    %375 = vmatpush1.msra.mxu0 0.0
    %376 = vmatprep.subr.mxu0 0.0
    %377 = vmatpush1.msra.mxu0 0.0
    %378 = vmatprep.mubr.f32.mxu0 0.0
    %379 = vmatmul.mubr.f32.gmra.mrb[0].mxu0 %v312
    %v380 = vpop.f32.mrb[0].mxu0
    %v381 = vadd.f32 %v86, %v380
    %v382 = vpop.f32.mrb[0].mxu0
    %383 = vdwg.mxu0
    %384 = vst.msk [vmem:[#allocation7] sm:$0xff] %vm91, %v162
    %385 = vst.msk [vmem:[#allocation7 + $0x8] sm:$0xff] %vm91, %v235
    %386 = vst.msk [vmem:[#allocation7 + $0x10] sm:$0xff] %vm91, %v308
    %387 = vst.msk [vmem:[#allocation7 + $0x18] sm:$0xff] %vm91, %v381
    // Predicated region
    $region22: #{tpu_custom_call.1} parent=1 // pred_check
      _
    $region23: #{tpu_custom_call.1} parent=1 // pred_check_branch
      %389 = sbr.rel (0) target = $region25
    $region24: #{tpu_custom_call.1} parent=1 // pred_region
      %s391 = ssub.s32 512, 512
      %392 = vsyncadd [#allocation4], %s391
      %s393 = sshll.u32 [#allocation7], 4
      %s394 = int_to_ptr.vmem [resolvable:$true] %s393
      %399 = dma.vmem_to_hbm [thread:$0]  %s394, 512, %s3, [#allocation4], 128, 128, 8
    $region25: #{tpu_custom_call.1} parent=1 // pred_fallthru
      _
    // Predicated region
    $region26: #{tpu_custom_call.1} parent=1 // pred_check
      _
    $region27: #{tpu_custom_call.1} parent=1 // pred_check_branch
      %401 = sbr.rel (0) target = $region29
    $region28: #{tpu_custom_call.1} parent=1 // pred_region
      %402 = dma.done [#allocation4], 512
    $region29: #{tpu_custom_call.1} parent=1 // pred_fallthru
      _
    %403 = vsyncpa [#allocation3], 1
    %404 = vsyncpa [#allocation6], 1
    %405 = vsyncpa [#allocation4], 1

</llo_original>
